<compile_context>
chip_gen: v5e
topology: v5e:2x2
jax: 0.10.0
libtpu: 0.0.40
codegen_flags: <defaults>
</compile_context>

<pallas_src>
import jax
import jax.numpy as jnp
from jax.experimental import pallas as pl
from jax.experimental.pallas import tpu as pltpu


def _relu_kernel(x_ref, o_ref):
    # Pure VPU elementwise max on the current VMEM tile; scalar zero avoids a
    # per-grid-step broadcast_in_dim materialization (JAX does not CSE it).
    x = x_ref[...]
    o_ref[...] = jnp.maximum(x, jnp.array(0, dtype=x.dtype))


_LANE = 128
_MIN_PALLAS_BYTES = 128 * 1024    # below this, launch overhead > any kernel win
_TILE_BYTES_TARGET = 8 << 20      # ~8 MiB blocks: step overhead ~3-6% even on v7x HBM
_MIN_SPLIT_BYTES = 256 << 10      # >= this, force >=2 balanced steps (v7x has 2 TCs)
_VMEM_LIMIT_BYTES = 48 << 20      # 4 x ~8 MiB buffers + headroom; < v7x 64 MiB physical


def _round_up(v: int, m: int) -> int:
    return ((v + m - 1) // m) * m


def relu_pallas(x: jax.Array, *, inplace: bool = False) -> jax.Array:
    """ReLU(x). Hot path is a Pallas TPU kernel over a lane-dense (rows,128) slab."""
    n = x.size
    itemsize = x.dtype.itemsize
    nbytes = n * itemsize

    # Native sublane tile per dtype width (f32:8, bf16/f16:16, int8/fp8:32).
    subl = {4: 8, 2: 16, 1: 32}.get(itemsize, 8)

    # Tiny or ragged sizes: plain XLA elementwise (fuses / already at roofline).
    # TODO(synk): ragged tails could use an in-kernel iota mask instead of a
    # fallback, but a bare mem-bound ReLU gains nothing from that.
    if nbytes < _MIN_PALLAS_BYTES or (n % _LANE) != 0 or (n // _LANE) < subl:
        return jnp.maximum(x, jnp.zeros((), dtype=x.dtype))

    rows = n // _LANE
    slab = x.reshape(rows, _LANE)  # pure reshape: no pad, no extra HBM pass

    # --- Balanced block selection ------------------------------------------
    bytes_per_row = _LANE * itemsize
    target_rows = max(subl, _TILE_BYTES_TARGET // bytes_per_row)
    nblocks = pl.cdiv(rows, target_rows)
    # Ensure >=2 balanced grid steps for non-trivial tensors so the "parallel"
    # grid axis can shard across both TensorCores on v7x (no-op on v5e/v6e).
    if nblocks == 1 and nbytes >= _MIN_SPLIT_BYTES and rows >= 2 * subl:
        nblocks = 2
    if nblocks == 1:
        tile_rows = rows  # full array dim: allowed even if not a sublane multiple
    else:
        # Balanced, sublane-aligned blocks -> no nearly-empty trailing step.
        tile_rows = _round_up(pl.cdiv(rows, nblocks), subl)
    grid = (pl.cdiv(rows, tile_rows),)  # partial last block is masked by Pallas

    out_slab = pl.pallas_call(
        _relu_kernel,
        out_shape=jax.ShapeDtypeStruct((rows, _LANE), x.dtype),
        grid=grid,
        in_specs=[pl.BlockSpec((tile_rows, _LANE), lambda i: (i, 0))],
        out_specs=pl.BlockSpec((tile_rows, _LANE), lambda i: (i, 0)),
        compiler_params=pltpu.CompilerParams(
            dimension_semantics=("parallel",),     # shard 1-D grid across TCs (v7x)
            vmem_limit_bytes=_VMEM_LIMIT_BYTES,    # ~8 MiB tiles x 4 buffers + slack
        ),
        cost_estimate=pl.CostEstimate(
            flops=n, transcendentals=0, bytes_accessed=2 * nbytes
        ),
        # PyTorch inplace semantics only; no HBM-traffic win unless x is donated.
        input_output_aliases={0: 0} if inplace else {},
    )(slab)

    return out_slab.reshape(x.shape)


if __name__ == "__main__":
    key = jax.random.PRNGKey(0)
    # Shape from the original module spec: x264 = torch.randn([1, 576, 14, 14])
    # (112896 elems = 441 KiB f32 -> Pallas path, 882 rows -> 2 balanced blocks).
    x = jax.random.normal(key, (1, 576, 14, 14), dtype=jnp.float32)

    y = relu_pallas(x)
    jax.block_until_ready(y)

    y_ref = jnp.maximum(x, 0.0)
    assert y.shape == x.shape and y.dtype == x.dtype
    assert bool(jnp.array_equal(y, y_ref)), "ReLU mismatch vs reference (pallas path)"

    # Tiny input exercises the jnp fallback (kernel launch not worth it there).
    x_small = jax.random.normal(jax.random.PRNGKey(1), (2, 4, 16, 16), dtype=jnp.float32)
    y_small = relu_pallas(x_small)
    jax.block_until_ready(y_small)
    assert bool(jnp.array_equal(y_small, jnp.maximum(x_small, 0.0))), "fallback mismatch"

    print("KERNEL_OK")
</pallas_src>

<mosaic_0001>
module attributes {stable_mosaic.version = 11 : i64} {
  func.func @_relu_kernel(%arg0: i32, %arg1: memref<448x128xf32, #tpu.memory_space<vmem>>, %arg2: memref<448x128xf32, #tpu.memory_space<vmem>>) attributes {dimension_semantics = [#tpu.dimension_semantics<parallel>], iteration_bounds = array<i64: 2>, scalar_prefetch = 0 : i64, scratch_operands = 0 : i64, tpu.core_type = #tpu.core_type<tc>, window_params = [{transform_indices = @transform_0, window_bounds = array<i64: 448, 128>}, {transform_indices = @transform_1, window_bounds = array<i64: 448, 128>}]} {
    %c0 = arith.constant 0 : index
    %c0_0 = arith.constant 0 : index
    %0 = vector.load %arg1[%c0, %c0_0] : memref<448x128xf32, #tpu.memory_space<vmem>>, vector<448x128xf32>
    %cst = arith.constant 0.000000e+00 : f32
    %1 = vector.broadcast %cst : f32 to vector<448x128xf32>
    %2 = arith.maximumf %0, %1 : vector<448x128xf32>
    %c0_1 = arith.constant 0 : index
    %c0_2 = arith.constant 0 : index
    %3 = vector.load %arg2[%c0_1, %c0_2] : memref<448x128xf32, #tpu.memory_space<vmem>>, vector<448x128xf32>
    tpu.vector_store %arg2[%c0_1, %c0_2], %2 {strides = array<i32>} : memref<448x128xf32, #tpu.memory_space<vmem>>, vector<448x128xf32>,
    return
  }
  func.func @transform_0(%arg0: i32) -> (i32, i32) {
    %c0_i32 = arith.constant 0 : i32
    %c0_i32_0 = arith.constant 0 : i32
    return %arg0, %c0_i32 : i32, i32
  }
  func.func @transform_1(%arg0: i32) -> (i32, i32) {
    %c0_i32 = arith.constant 0 : i32
    %c0_i32_0 = arith.constant 0 : i32
    return %arg0, %c0_i32 : i32, i32
  }
}

</mosaic_0001>

<llo_original>
// kernel: tpu_custom_call.1
$region0: #{tpu_custom_call.1}
  #allocation0 [shape = 'u32[]', space=smem, size = 0x4, offset = 0x4, fixed_abs, tag = 'smem constant byte address 0x4 - core index']
  #allocation1 [shape = 'u32[72,128]{1,0:T(1,128)}', space=vmem, size = 0x9000, scoped, tag = 'internal scratch']
  %s0 = inlined_call_operand.hbm [shape: f32[882,128], index: 0, kind: input, shape index: {}]
  %s1 = inlined_call_operand.hbm [shape: f32[882,128], index: 1, kind: output, shape index: {}]
  %s2 = sld [smem:[#allocation0]]
  $region41: #{tpu_custom_call.1} parent=0
    _
  %s4 = ssub.s32 1, %s2
  %s5 = scalar_select 0, %s4, %s2
  $region1: #{tpu_custom_call.1} parent=0
    #allocation2 [shape = 'u8[458752]{0}', space=vmem, size = 0x70000, scoped, tag = 'input window, operand 0']
    #allocation3 [shape = 's32[2]{0}', space=sflag, size = 0x8, scoped, tag = 'scoped memory for tpu_custom_call.1']
    #allocation4 [shape = 's32[2]{0}', space=sflag, size = 0x8, scoped, tag = 'scoped memory for tpu_custom_call.1']
    #allocation5 [shape = 'u8[458752]{0}', space=vmem, size = 0x70000, scoped, tag = 'output window, operand 0']
    %6 = vsyncpa [#allocation3], 0
    %s7 = scalar_lea.sflag [#allocation3], 1
    %8 = vsyncpa %s7, 0
    %9 = vsyncpa [#allocation4], 0
    %s10 = scalar_lea.sflag [#allocation4], 1
    %11 = vsyncpa %s10, 0
    loop: start=0, step=1, limit=4
    $region2: #{tpu_custom_call.1} parent=1 // loop_pre_header
      _
    $region3: #{tpu_custom_call.1} parent=1 // loop_header
      %s13 = sphi 0, %s17
      %p14 = scmp.ge.s32.totalorder %s13, 4
      %s23 = sphi 0, %s25
      %s26 = sphi 0, %s23
      %s27 = sphi 0, %s26
      %s43 = sphi 0, %s27
      %s49 = sphi 0, %s51
      %s52 = sphi 0, %s49
      %s53 = sphi 0, %s52
      %s69 = sphi 0, %s53
    $region4: #{tpu_custom_call.1} parent=1 // loop_header_branch
      %16 = sbr.rel (%p14) target = $region8
    $region5: #{tpu_custom_call.1} parent=1 // loop_body
      %s18 = ssub.s32 %s13, 1
      %s19 = ssub.s32 %s13, 2
      %s20 = sadd.s32 %s13, 1
      %s21 = ssub.s32 %s13, %s20
      %p22 = scmp.eq.s32.totalorder %s21, 0
      %s24 = sadd.s32 %s23, 1
      %s25 = scalar_select %p22, %s23, %s24
      %p28 = pneg %p22
      %p29 = scmp.eq.s32.totalorder %s13, 1
      %p30 = por %p28, %p29
      %p31 = scmp.ne.s32.totalorder %s23, %s26
      %p32 = scmp.eq.s32.totalorder %s13, 0
      %p33 = por %p31, %p32
      %p34 = scmp.ne.s32.totalorder %s23, %s26
      %p35 = scmp.eq.s32.totalorder %s18, 1
      %p36 = por %p34, %p35
      %p37 = scmp.ne.s32.totalorder %s26, %s27
      %p38 = scmp.eq.s32.totalorder %s18, 0
      %p39 = por %p37, %p38
      %p40 = scmp.ne.s32.totalorder %s26, %s27
      %p41 = scmp.eq.s32.totalorder %s19, 1
      %p42 = por %p40, %p41
      %p44 = scmp.ne.s32.totalorder %s27, %s43
      %p45 = scmp.eq.s32.totalorder %s19, 0
      %p46 = por %p44, %p45
      %s47 = ssub.s32 %s13, %s20
      %p48 = scmp.eq.s32.totalorder %s47, 0
      %s50 = sadd.s32 %s49, 1
      %s51 = scalar_select %p48, %s49, %s50
      %p54 = pneg %p48
      %p55 = scmp.eq.s32.totalorder %s13, 1
      %p56 = por %p54, %p55
      %p57 = scmp.ne.s32.totalorder %s49, %s52
      %p58 = scmp.eq.s32.totalorder %s13, 0
      %p59 = por %p57, %p58
      %p60 = scmp.ne.s32.totalorder %s49, %s52
      %p61 = scmp.eq.s32.totalorder %s18, 1
      %p62 = por %p60, %p61
      %p63 = scmp.ne.s32.totalorder %s52, %s53
      %p64 = scmp.eq.s32.totalorder %s18, 0
      %p65 = por %p63, %p64
      %p66 = scmp.ne.s32.totalorder %s52, %s53
      %p67 = scmp.eq.s32.totalorder %s19, 1
      %p68 = por %p66, %p67
      %p70 = scmp.ne.s32.totalorder %s53, %s69
      %p71 = scmp.eq.s32.totalorder %s19, 0
      %p72 = por %p70, %p71
      %p73 = scmp.le.s32.totalorder 1, %s13
      %p74 = scmp.lt.s32.totalorder %s13, 3
      %p75 = pnand %p73, %p74
      %p76 = pneg %p75
      // Predicated region
      $region9: #{tpu_custom_call.1} parent=5 // pred_check
        _
      $region10: #{tpu_custom_call.1} parent=5 // pred_check_branch
        %78 = sbr.rel (%p75) target = $region12
      $region11: #{tpu_custom_call.1} parent=5 // pred_region
        %s79 = ssub.s32 %s13, 1
      $region12: #{tpu_custom_call.1} parent=5 // pred_fallthru
        _
      %p80 = scmp.lt.s32.totalorder %s13, 2
      // Predicated region
      $region13: #{tpu_custom_call.1} parent=5 // pred_check
        %p81 = pneg %p80
      $region14: #{tpu_custom_call.1} parent=5 // pred_check_branch
        %83 = sbr.rel (%p81) target = $region16
      $region15: #{tpu_custom_call.1} parent=5 // pred_region
        // Predicated region
        $region17: #{tpu_custom_call.1} parent=15 // pred_check
          %p84 = pneg %p33
        $region18: #{tpu_custom_call.1} parent=15 // pred_check_branch
          %86 = sbr.rel (%p84) target = $region20
        $region19: #{tpu_custom_call.1} parent=15 // pred_region
          %s87 = sand.u32 %s23, 1
          %s88 = scalar_lea.sflag [#allocation3], %s87
          %s89 = sand.u32 %s23, 1
          %s90 = smul.addr %s89, 448
          %s91 = scalar_lea.vmem [#allocation2], %s90
          %s92 = smul.u32 56, %s13
          %s93 = ssub.s32 111, %s92
          %p94 = scmp.lt.s32.totalorder %s93, 56
          %s95 = scalar_select %p94, %s93, 56
          %s96 = smul.u32 8, %s95
          %s97 = ssub.s32 448, %s96
          %s98 = sshll.u32 %s97, 4
          %99 = vsyncadd %s88, %s98
          %p100 = scmp.ne.s32.totalorder 0, %s96
          %s101 = smul.addr %s92, 8
          %s102 = scalar_lea.hbm %s0, %s101
          %s103 = smul.u32 8, %s95
          %s104 = sshll.u32 %s102, 4
          %s105 = int_to_ptr.hbm [resolvable:$true] %s104
          %s106 = sshll.u32 %s91, 4
          %s107 = int_to_ptr.vmem [resolvable:$true] %s106
          %s108 = sshll.u32 %s103, 4
          %112 = dma.hbm_to_vmem [thread:$0]  (%p100), %s105, %s108, %s107, %s88, 128, 128, 8
        $region20: #{tpu_custom_call.1} parent=15 // pred_fallthru
          _
      $region16: #{tpu_custom_call.1} parent=5 // pred_fallthru
        _
      %p113 = scmp.le.s32.totalorder 1, %s13
      %p114 = scmp.lt.s32.totalorder %s13, 3
      %p115 = pnand %p113, %p114
      %p116 = pneg %p115
      // Predicated region
      $region21: #{tpu_custom_call.1} parent=5 // pred_check
        _
      $region22: #{tpu_custom_call.1} parent=5 // pred_check_branch
        %118 = sbr.rel (%p115) target = $region24
      $region23: #{tpu_custom_call.1} parent=5 // pred_region
        %s119 = ssub.s32 %s13, 1
        %s120 = sand.u32 %s26, 1
        %s121 = scalar_lea.sflag [#allocation3], %s120
        %s122 = sand.u32 %s26, 1
        %s123 = smul.addr %s122, 448
        %s124 = scalar_lea.vmem [#allocation2], %s123
        // Predicated region
        $region25: #{tpu_custom_call.1} parent=23 // pred_check
          %p125 = pneg %p39
        $region26: #{tpu_custom_call.1} parent=23 // pred_check_branch
          %127 = sbr.rel (%p125) target = $region28
        $region27: #{tpu_custom_call.1} parent=23 // pred_region
          %129 = dma.done %s121, 7168
        $region28: #{tpu_custom_call.1} parent=23 // pred_fallthru
          _
        %s130 = sand.u32 %s26, 1
        %s131 = scalar_lea.sflag [#allocation3], %s130
        %s132 = sand.u32 %s26, 1
        %s133 = smul.addr %s132, 448
        %s134 = scalar_lea.vmem [#allocation2], %s133
        %p135 = pneg %p39
        %p136 = pneg %p36
        %p137 = pneg %p65
        %p138 = pneg %p62
        %s139 = sand.u32 %s52, 1
        %s140 = scalar_lea.sflag [#allocation4], %s139
        %s141 = sand.u32 %s52, 1
        %s142 = smul.addr %s141, 448
        %s143 = scalar_lea.vmem [#allocation5], %s142
        %s144 = smul.u32 56, %s18
        %s145 = ssub.s32 111, %s144
        %p146 = scmp.lt.s32.totalorder %s145, 56
        %s147 = scalar_select %p146, %s145, 56
        %s148 = smul.u32 8, %s147
        %s149 = smul.u32 56, %s18
        %s150 = ssub.s32 111, %s149
        %p151 = scmp.lt.s32.totalorder %s150, 56
        %s152 = scalar_select %p151, %s150, 56
        %s153 = smul.u32 8, %s152
        %v154 = vld [vmem:[%s124] sm:$0xff]
        %v155 = vld [vmem:[%s124 + $0x8] sm:$0xff]
        %v156 = vld [vmem:[%s124 + $0x10] sm:$0xff]
        %v157 = vld [vmem:[%s124 + $0x18] sm:$0xff]
        %v158 = vld [vmem:[%s124 + $0x20] sm:$0xff]
        %v159 = vld [vmem:[%s124 + $0x28] sm:$0xff]
        %v160 = vld [vmem:[%s124 + $0x30] sm:$0xff]
        %v161 = vld [vmem:[%s124 + $0x38] sm:$0xff]
        %v162 = vld [vmem:[%s124 + $0x40] sm:$0xff]
        %v163 = vld [vmem:[%s124 + $0x48] sm:$0xff]
        %v164 = vld [vmem:[%s124 + $0x50] sm:$0xff]
        %v165 = vld [vmem:[%s124 + $0x58] sm:$0xff]
        %v166 = vld [vmem:[%s124 + $0x60] sm:$0xff]
        %v167 = vld [vmem:[%s124 + $0x68] sm:$0xff]
        %v168 = vld [vmem:[%s124 + $0x70] sm:$0xff]
        %v169 = vld [vmem:[%s124 + $0x78] sm:$0xff]
        %v170 = vld [vmem:[%s124 + $0x80] sm:$0xff]
        %v171 = vld [vmem:[%s124 + $0x88] sm:$0xff]
        %v172 = vld [vmem:[%s124 + $0x90] sm:$0xff]
        %v173 = vld [vmem:[%s124 + $0x98] sm:$0xff]
        %v174 = vld [vmem:[%s124 + $0xa0] sm:$0xff]
        %v175 = vld [vmem:[%s124 + $0xa8] sm:$0xff]
        %v176 = vld [vmem:[%s124 + $0xb0] sm:$0xff]
        %v177 = vld [vmem:[%s124 + $0xb8] sm:$0xff]
        %v178 = vld [vmem:[%s124 + $0xc0] sm:$0xff]
        %v179 = vld [vmem:[%s124 + $0xc8] sm:$0xff]
        %v180 = vld [vmem:[%s124 + $0xd0] sm:$0xff]
        %v181 = vld [vmem:[%s124 + $0xd8] sm:$0xff]
        %v182 = vld [vmem:[%s124 + $0xe0] sm:$0xff]
        %v183 = vld [vmem:[%s124 + $0xe8] sm:$0xff]
        %v184 = vld [vmem:[%s124 + $0xf0] sm:$0xff]
        %v185 = vld [vmem:[%s124 + $0xf8] sm:$0xff]
        %v186 = vld [vmem:[%s124 + $0x100] sm:$0xff]
        %v187 = vld [vmem:[%s124 + $0x108] sm:$0xff]
        %v188 = vld [vmem:[%s124 + $0x110] sm:$0xff]
        %v189 = vld [vmem:[%s124 + $0x118] sm:$0xff]
        %v190 = vld [vmem:[%s124 + $0x120] sm:$0xff]
        %v191 = vld [vmem:[%s124 + $0x128] sm:$0xff]
        %v192 = vld [vmem:[%s124 + $0x130] sm:$0xff]
        %v193 = vld [vmem:[%s124 + $0x138] sm:$0xff]
        %v194 = vld [vmem:[%s124 + $0x140] sm:$0xff]
        %v195 = vld [vmem:[%s124 + $0x148] sm:$0xff]
        %v196 = vld [vmem:[%s124 + $0x150] sm:$0xff]
        %v197 = vld [vmem:[%s124 + $0x158] sm:$0xff]
        %v198 = vld [vmem:[%s124 + $0x160] sm:$0xff]
        %v199 = vld [vmem:[%s124 + $0x168] sm:$0xff]
        %v200 = vld [vmem:[%s124 + $0x170] sm:$0xff]
        %v201 = vld [vmem:[%s124 + $0x178] sm:$0xff]
        %v202 = vld [vmem:[%s124 + $0x180] sm:$0xff]
        %v203 = vld [vmem:[%s124 + $0x188] sm:$0xff]
        %v204 = vld [vmem:[%s124 + $0x190] sm:$0xff]
        %v205 = vld [vmem:[%s124 + $0x198] sm:$0xff]
        %v206 = vld [vmem:[%s124 + $0x1a0] sm:$0xff]
        %v207 = vld [vmem:[%s124 + $0x1a8] sm:$0xff]
        %v208 = vld [vmem:[%s124 + $0x1b0] sm:$0xff]
        %v209 = vld [vmem:[%s124 + $0x1b8] sm:$0xff]
        %v210 = vmax.f32 %v154, 0.0
        %v211 = vmax.f32 %v155, 0.0
        %v212 = vmax.f32 %v156, 0.0
        %v213 = vmax.f32 %v157, 0.0
        %v214 = vmax.f32 %v158, 0.0
        %v215 = vmax.f32 %v159, 0.0
        %v216 = vmax.f32 %v160, 0.0
        %v217 = vmax.f32 %v161, 0.0
        %v218 = vmax.f32 %v162, 0.0
        %v219 = vmax.f32 %v163, 0.0
        %v220 = vmax.f32 %v164, 0.0
        %v221 = vmax.f32 %v165, 0.0
        %v222 = vmax.f32 %v166, 0.0
        %v223 = vmax.f32 %v167, 0.0
        %v224 = vmax.f32 %v168, 0.0
        %v225 = vmax.f32 %v169, 0.0
        %v226 = vmax.f32 %v170, 0.0
        %v227 = vmax.f32 %v171, 0.0
        %v228 = vmax.f32 %v172, 0.0
        %v229 = vmax.f32 %v173, 0.0
        %v230 = vmax.f32 %v174, 0.0
        %v231 = vmax.f32 %v175, 0.0
        %v232 = vmax.f32 %v176, 0.0
        %v233 = vmax.f32 %v177, 0.0
        %v234 = vmax.f32 %v178, 0.0
        %v235 = vmax.f32 %v179, 0.0
        %v236 = vmax.f32 %v180, 0.0
        %v237 = vmax.f32 %v181, 0.0
        %v238 = vmax.f32 %v182, 0.0
        %v239 = vmax.f32 %v183, 0.0
        %v240 = vmax.f32 %v184, 0.0
        %v241 = vmax.f32 %v185, 0.0
        %v242 = vmax.f32 %v186, 0.0
        %v243 = vmax.f32 %v187, 0.0
        %v244 = vmax.f32 %v188, 0.0
        %v245 = vmax.f32 %v189, 0.0
        %v246 = vmax.f32 %v190, 0.0
        %v247 = vmax.f32 %v191, 0.0
        %v248 = vmax.f32 %v192, 0.0
        %v249 = vmax.f32 %v193, 0.0
        %v250 = vmax.f32 %v194, 0.0
        %v251 = vmax.f32 %v195, 0.0
        %v252 = vmax.f32 %v196, 0.0
        %v253 = vmax.f32 %v197, 0.0
        %v254 = vmax.f32 %v198, 0.0
        %v255 = vmax.f32 %v199, 0.0
        %v256 = vmax.f32 %v200, 0.0
        %v257 = vmax.f32 %v201, 0.0
        %v258 = vmax.f32 %v202, 0.0
        %v259 = vmax.f32 %v203, 0.0
        %v260 = vmax.f32 %v204, 0.0
        %v261 = vmax.f32 %v205, 0.0
        %v262 = vmax.f32 %v206, 0.0
        %v263 = vmax.f32 %v207, 0.0
        %v264 = vmax.f32 %v208, 0.0
        %v265 = vmax.f32 %v209, 0.0
        %266 = vst [vmem:[%s143] sm:$0xff] %v210
        %267 = vst [vmem:[%s143 + $0x8] sm:$0xff] %v211
        %268 = vst [vmem:[%s143 + $0x10] sm:$0xff] %v212
        %269 = vst [vmem:[%s143 + $0x18] sm:$0xff] %v213
        %270 = vst [vmem:[%s143 + $0x20] sm:$0xff] %v214
        %271 = vst [vmem:[%s143 + $0x28] sm:$0xff] %v215
        %272 = vst [vmem:[%s143 + $0x30] sm:$0xff] %v216
        %273 = vst [vmem:[%s143 + $0x38] sm:$0xff] %v217
        %274 = vst [vmem:[%s143 + $0x40] sm:$0xff] %v218
        %275 = vst [vmem:[%s143 + $0x48] sm:$0xff] %v219
        %276 = vst [vmem:[%s143 + $0x50] sm:$0xff] %v220
        %277 = vst [vmem:[%s143 + $0x58] sm:$0xff] %v221
        %278 = vst [vmem:[%s143 + $0x60] sm:$0xff] %v222
        %279 = vst [vmem:[%s143 + $0x68] sm:$0xff] %v223
        %280 = vst [vmem:[%s143 + $0x70] sm:$0xff] %v224
        %281 = vst [vmem:[%s143 + $0x78] sm:$0xff] %v225
        %282 = vst [vmem:[%s143 + $0x80] sm:$0xff] %v226
        %283 = vst [vmem:[%s143 + $0x88] sm:$0xff] %v227
        %284 = vst [vmem:[%s143 + $0x90] sm:$0xff] %v228
        %285 = vst [vmem:[%s143 + $0x98] sm:$0xff] %v229
        %286 = vst [vmem:[%s143 + $0xa0] sm:$0xff] %v230
        %287 = vst [vmem:[%s143 + $0xa8] sm:$0xff] %v231
        %288 = vst [vmem:[%s143 + $0xb0] sm:$0xff] %v232
        %289 = vst [vmem:[%s143 + $0xb8] sm:$0xff] %v233
        %290 = vst [vmem:[%s143 + $0xc0] sm:$0xff] %v234
        %291 = vst [vmem:[%s143 + $0xc8] sm:$0xff] %v235
        %292 = vst [vmem:[%s143 + $0xd0] sm:$0xff] %v236
        %293 = vst [vmem:[%s143 + $0xd8] sm:$0xff] %v237
        %294 = vst [vmem:[%s143 + $0xe0] sm:$0xff] %v238
        %295 = vst [vmem:[%s143 + $0xe8] sm:$0xff] %v239
        %296 = vst [vmem:[%s143 + $0xf0] sm:$0xff] %v240
        %297 = vst [vmem:[%s143 + $0xf8] sm:$0xff] %v241
        %298 = vst [vmem:[%s143 + $0x100] sm:$0xff] %v242
        %299 = vst [vmem:[%s143 + $0x108] sm:$0xff] %v243
        %300 = vst [vmem:[%s143 + $0x110] sm:$0xff] %v244
        %301 = vst [vmem:[%s143 + $0x118] sm:$0xff] %v245
        %302 = vst [vmem:[%s143 + $0x120] sm:$0xff] %v246
        %303 = vst [vmem:[%s143 + $0x128] sm:$0xff] %v247
        %304 = vst [vmem:[%s143 + $0x130] sm:$0xff] %v248
        %305 = vst [vmem:[%s143 + $0x138] sm:$0xff] %v249
        %306 = vst [vmem:[%s143 + $0x140] sm:$0xff] %v250
        %307 = vst [vmem:[%s143 + $0x148] sm:$0xff] %v251
        %308 = vst [vmem:[%s143 + $0x150] sm:$0xff] %v252
        %309 = vst [vmem:[%s143 + $0x158] sm:$0xff] %v253
        %310 = vst [vmem:[%s143 + $0x160] sm:$0xff] %v254
        %311 = vst [vmem:[%s143 + $0x168] sm:$0xff] %v255
        %312 = vst [vmem:[%s143 + $0x170] sm:$0xff] %v256
        %313 = vst [vmem:[%s143 + $0x178] sm:$0xff] %v257
        %314 = vst [vmem:[%s143 + $0x180] sm:$0xff] %v258
        %315 = vst [vmem:[%s143 + $0x188] sm:$0xff] %v259
        %316 = vst [vmem:[%s143 + $0x190] sm:$0xff] %v260
        %317 = vst [vmem:[%s143 + $0x198] sm:$0xff] %v261
        %318 = vst [vmem:[%s143 + $0x1a0] sm:$0xff] %v262
        %319 = vst [vmem:[%s143 + $0x1a8] sm:$0xff] %v263
        %320 = vst [vmem:[%s143 + $0x1b0] sm:$0xff] %v264
        %321 = vst [vmem:[%s143 + $0x1b8] sm:$0xff] %v265
        %s322 = sand.u32 %s52, 1
        %s323 = scalar_lea.sflag [#allocation4], %s322
        %s324 = sand.u32 %s52, 1
        %s325 = smul.addr %s324, 448
        %s326 = scalar_lea.vmem [#allocation5], %s325
        // Predicated region
        $region29: #{tpu_custom_call.1} parent=23 // pred_check
          %p327 = pneg %p62
        $region30: #{tpu_custom_call.1} parent=23 // pred_check_branch
          %329 = sbr.rel (%p327) target = $region32
        $region31: #{tpu_custom_call.1} parent=23 // pred_region
          %s330 = smul.u32 56, %s18
          %s331 = ssub.s32 111, %s330
          %p332 = scmp.lt.s32.totalorder %s331, 56
          %s333 = scalar_select %p332, %s331, 56
          %s334 = smul.u32 8, %s333
          %s335 = ssub.s32 448, %s334
          %s336 = sshll.u32 %s335, 4
          %337 = vsyncadd %s323, %s336
          %p338 = scmp.ne.s32.totalorder 0, %s334
          %s339 = smul.addr %s330, 8
          %s340 = scalar_lea.hbm %s1, %s339
          %s341 = smul.u32 8, %s333
          %s342 = sshll.u32 %s326, 4
          %s343 = int_to_ptr.vmem [resolvable:$true] %s342
          %s344 = sshll.u32 %s340, 4
          %s345 = int_to_ptr.hbm [resolvable:$true] %s344
          %s346 = sshll.u32 %s341, 4
          %350 = dma.vmem_to_hbm [thread:$0]  (%p338), %s343, %s346, %s345, %s323, 128, 128, 8
        $region32: #{tpu_custom_call.1} parent=23 // pred_fallthru
          _
      $region24: #{tpu_custom_call.1} parent=5 // pred_fallthru
        _
      %p351 = scmp.le.s32.totalorder 2, %s13
      // Predicated region
      $region33: #{tpu_custom_call.1} parent=5 // pred_check
        %p352 = pneg %p351
      $region34: #{tpu_custom_call.1} parent=5 // pred_check_branch
        %354 = sbr.rel (%p352) target = $region36
      $region35: #{tpu_custom_call.1} parent=5 // pred_region
        %s355 = ssub.s32 %s13, 2
        // Predicated region
        $region37: #{tpu_custom_call.1} parent=35 // pred_check
          %p356 = pneg %p68
        $region38: #{tpu_custom_call.1} parent=35 // pred_check_branch
          %358 = sbr.rel (%p356) target = $region40
        $region39: #{tpu_custom_call.1} parent=35 // pred_region
          %s359 = sand.u32 %s53, 1
          %s360 = scalar_lea.sflag [#allocation4], %s359
          %s361 = sand.u32 %s53, 1
          %s362 = smul.addr %s361, 448
          %s363 = scalar_lea.vmem [#allocation5], %s362
          %365 = dma.done %s360, 7168
        $region40: #{tpu_custom_call.1} parent=35 // pred_fallthru
          _
      $region36: #{tpu_custom_call.1} parent=5 // pred_fallthru
        _
    $region6: #{tpu_custom_call.1} parent=1 // loop_footer
      %s17 = sadd.s32 1, %s13
    $region7: #{tpu_custom_call.1} parent=1 // loop_footer_branch
      %12 = sbr.rel target = $region3
    $region8: #{tpu_custom_call.1} parent=1 // loop_exit
      _
    %366 = vsyncpa [#allocation3], 1
    %s367 = scalar_lea.sflag [#allocation3], 1
    %368 = vsyncpa %s367, 1
    %369 = vsyncpa [#allocation4], 1
    %s370 = scalar_lea.sflag [#allocation4], 1
    %371 = vsyncpa %s370, 1

</llo_original>
